<compile_context>
chip_gen: v5e
topology: v5e:2x2
jax: 0.10.0
libtpu: 0.0.40
codegen_flags: <defaults>
</compile_context>

<pallas_src>
import functools

import jax
import jax.numpy as jnp
from jax import lax
from jax.experimental import pallas as pl
from jax.experimental.pallas import tpu as pltpu

# ---- model hyperparameters (small, consistent with the module) -------------
EMBEDDING_DIM = 32
VOCABULARY_SIZE = 128
DECODER_BLOCKS = 2
MAX_SEQ_LEN = 8
LN_EPS = 1e-5  # torch.nn.LayerNorm default


# ---- Pallas kernel: fused gather + pos-add + LayerNorm + projection ---------
def gpt2_fused_kernel(ids_ref, wte_ref, wpe_ref, gb_ref, w_ref, o_ref, x_ref,
                      *, seq_len, inv_d, eps):
    # ids_ref: [T]    int32  SMEM (scalar prefetch) — flattened token ids
    # wte_ref: [V, D] f32    token-embedding table (whole, ~16 KiB in VMEM)
    # wpe_ref: [S, D] f32    positional embeddings for the current seq len
    # gb_ref:  [2, D] f32    row 0 = LayerNorm gamma, row 1 = beta
    # w_ref:   [D, V] bf16   output projection (nn.Linear weight, transposed)
    # o_ref:   [S, V] f32    logits for this sequence (one sequence per block)
    # x_ref:   [S, D] f32    VMEM scratch for the gathered embeddings
    b = pl.program_id(0)
    base = b * seq_len

    # Token-embedding gather + folded positional add.  seq_len is a
    # compile-time constant, so this unrolls into S dynamic-start row loads.
    for r in range(seq_len):
        tok = ids_ref[base + r]                              # SMEM scalar read
        x_ref[r:r + 1, :] = (wte_ref[pl.ds(tok, 1), :]       # [1, D] gather
                             + wpe_ref[r:r + 1, :])          # pos add, no tile

    x = x_ref[...]                                           # [S, D] f32

    # LayerNorm (f32, single pass; variance clamped to avoid rsqrt(negative)).
    s1 = jnp.sum(x, axis=-1, keepdims=True)
    s2 = jnp.sum(x * x, axis=-1, keepdims=True)
    mean = s1 * inv_d
    var = jnp.maximum(s2 * inv_d - mean * mean, 0.0)
    rstd = lax.rsqrt(var + eps)
    scale = gb_ref[0:1, :] * rstd                            # gamma * 1/std
    shift = gb_ref[1:2, :] - mean * scale                    # beta - mean*scale
    y = x * scale + shift                                    # fused affine

    # Projection: bf16 MXU inputs, f32 accumulation (LN math stays f32).
    o_ref[...] = jnp.dot(y.astype(w_ref.dtype), w_ref[...],
                         preferred_element_type=jnp.float32).astype(o_ref.dtype)


# ---- full forward pass -------------------------------------------------------
def gpt2_forward(params, token_ids):
    """token_ids: [B, S] int32 -> logits [B, S, VOCABULARY_SIZE] f32."""
    B, S = token_ids.shape
    assert S <= MAX_SEQ_LEN, f"sequence length {S} exceeds MAX_SEQ_LEN={MAX_SEQ_LEN}"
    # Output block is (S, V); with B > 1 blocks, S must be sublane-aligned.
    assert B == 1 or S % 8 == 0, "S must be a multiple of 8 when B > 1"
    T = B * S
    D = EMBEDDING_DIM
    V = VOCABULARY_SIZE

    # TODO(synk): the reference `self.decoder` is a ModuleList of plain ints
    # (range(DECODER_BLOCKS)) with no defined decoder block; treated as identity.
    for _ in range(DECODER_BLOCKS):
        pass

    ids = token_ids.reshape(T).astype(jnp.int32)   # -> SMEM via scalar prefetch
    wpe_s = params["wpe"][:S]                      # static slice, [S, D]
    gb = params["ln_gb"]                           # [2, D] (gamma; beta)
    w_t = params["w_out_t"]                        # [D, V] bf16

    kernel = functools.partial(
        gpt2_fused_kernel, seq_len=S, inv_d=1.0 / D, eps=LN_EPS)

    cost = pl.CostEstimate(
        flops=2 * T * D * V,          # output projection
        transcendentals=T,            # rsqrt per token
        bytes_accessed=(T * 4 + V * D * 4 + S * D * 4 + 2 * D * 4
                        + D * V * 2 + T * V * 4),
    )

    grid_spec = pltpu.PrefetchScalarGridSpec(
        num_scalar_prefetch=1,        # ids land in SMEM, passed to index_maps
        grid=(B,),                    # one sequence per block
        in_specs=[
            pl.BlockSpec((V, D), lambda b, ids_p: (0, 0)),   # wte (whole table)
            pl.BlockSpec((S, D), lambda b, ids_p: (0, 0)),   # wpe[:S]
            pl.BlockSpec((2, D), lambda b, ids_p: (0, 0)),   # gamma/beta
            pl.BlockSpec((D, V), lambda b, ids_p: (0, 0)),   # projection weight
        ],
        out_specs=pl.BlockSpec((S, V), lambda b, ids_p: (b, 0)),
        scratch_shapes=[pltpu.VMEM((S, D), jnp.float32)],
    )

    logits2d = pl.pallas_call(
        kernel,
        out_shape=jax.ShapeDtypeStruct((T, V), jnp.float32),
        grid_spec=grid_spec,
        compiler_params=pltpu.CompilerParams(
            dimension_semantics=("parallel",)),   # both v7x TCs get a block
        cost_estimate=cost,
    )(ids, params["wte"], wpe_s, gb, w_t)

    return logits2d.reshape(B, S, V)


# ---- pure-JAX reference (for correctness check) ------------------------------
def gpt2_reference(params, token_ids):
    B, S = token_ids.shape
    tok = jnp.take(params["wte"], token_ids, axis=0)              # [B, S, D]
    pos = params["wpe"][:S][None, :, :]
    x = tok + pos
    mean = jnp.mean(x, axis=-1, keepdims=True)
    var = jnp.mean((x - mean) ** 2, axis=-1, keepdims=True)
    xn = (x - mean) * lax.rsqrt(var + LN_EPS)
    y = xn * params["ln_gb"][0] + params["ln_gb"][1]
    # Match the kernel's mixed precision: bf16 MXU inputs, f32 accumulate.
    y_bf = y.astype(jnp.bfloat16).astype(jnp.float32)
    w = params["w_out_t"].astype(jnp.float32)
    return jnp.einsum("bsd,dv->bsv", y_bf, w)


# ---- deterministic parameter init -------------------------------------------
def init_params(key):
    k_wte, k_wpe, k_w = jax.random.split(key, 3)
    wte = jax.random.normal(k_wte, (VOCABULARY_SIZE, EMBEDDING_DIM),
                            jnp.float32) * 0.02
    wpe = jax.random.normal(k_wpe, (MAX_SEQ_LEN, EMBEDDING_DIM),
                            jnp.float32) * 0.02
    # nn.Linear(EMBEDDING_DIM, VOCABULARY_SIZE, bias=False): weight [V, D],
    # forward is x @ W.T -> store the transpose [D, V] in bf16 (MXU-native);
    # accumulation stays f32 in-kernel.
    w_out = jax.random.normal(k_w, (VOCABULARY_SIZE, EMBEDDING_DIM),
                              jnp.float32) * 0.02
    return {
        "wte": wte,                                # f32: gather-only, no matmul
        "wpe": wpe,
        # gamma (row 0) and beta (row 1) packed into a single [2, D] block.
        "ln_gb": jnp.stack([jnp.ones((EMBEDDING_DIM,), jnp.float32),
                            jnp.zeros((EMBEDDING_DIM,), jnp.float32)], axis=0),
        "w_out_t": w_out.T.astype(jnp.bfloat16),
    }


if __name__ == "__main__":
    key = jax.random.PRNGKey(0)
    params = init_params(key)

    B, S = 2, MAX_SEQ_LEN
    token_ids = jax.random.randint(
        jax.random.PRNGKey(1), (B, S), 0, VOCABULARY_SIZE, dtype=jnp.int32
    )

    logits = gpt2_forward(params, token_ids)
    jax.block_until_ready(logits)

    assert logits.shape == (B, S, VOCABULARY_SIZE)
    assert logits.dtype == jnp.float32

    ref = gpt2_reference(params, token_ids)
    assert jnp.allclose(logits, ref, atol=2e-3, rtol=2e-3), (
        float(jnp.max(jnp.abs(logits - ref))))

    print("KERNEL_OK")
</pallas_src>

<mosaic_0001>
module attributes {stable_mosaic.version = 11 : i64} {
  func.func @gpt2_fused_kernel(%arg0: i32, %arg1: memref<16xi32, #tpu.memory_space<smem>>, %arg2: memref<128x32xf32, #tpu.memory_space<vmem>>, %arg3: memref<8x32xf32, #tpu.memory_space<vmem>>, %arg4: memref<2x32xf32, #tpu.memory_space<vmem>>, %arg5: memref<32x128xbf16, #tpu.memory_space<vmem>>, %arg6: memref<8x128xf32, #tpu.memory_space<vmem>>, %arg7: memref<8x32xf32, #tpu.memory_space<vmem>>) attributes {dimension_semantics = [#tpu.dimension_semantics<parallel>], iteration_bounds = array<i64: 2>, scalar_prefetch = 1 : i64, scratch_operands = 1 : i64, tpu.core_type = #tpu.core_type<tc>, window_params = [{pipeline_mode = #tpu.pipeline_mode<synchronous>, transform_indices = @transform_0, window_bounds = array<i64: 128, 32>}, {pipeline_mode = #tpu.pipeline_mode<synchronous>, transform_indices = @transform_1, window_bounds = array<i64: 8, 32>}, {pipeline_mode = #tpu.pipeline_mode<synchronous>, transform_indices = @transform_2, window_bounds = array<i64: 2, 32>}, {pipeline_mode = #tpu.pipeline_mode<synchronous>, transform_indices = @transform_3, window_bounds = array<i64: 32, 128>}, {transform_indices = @transform_4, window_bounds = array<i64: 8, 128>}]} {
    %c8_i32 = arith.constant 8 : i32
    %0 = arith.muli %arg0, %c8_i32 : i32
    %c0_i32 = arith.constant 0 : i32
    %1 = arith.addi %0, %c0_i32 : i32
    %2 = arith.index_cast %1 : i32 to index
    %3 = memref.load %arg1[%2] : memref<16xi32, #tpu.memory_space<smem>>
    %4 = arith.index_cast %3 : i32 to index
    %c0 = arith.constant 0 : index
    %5 = vector.load %arg2[%4, %c0] : memref<128x32xf32, #tpu.memory_space<vmem>>, vector<1x32xf32>
    %c0_0 = arith.constant 0 : index
    %c0_1 = arith.constant 0 : index
    %6 = vector.load %arg3[%c0_0, %c0_1] : memref<8x32xf32, #tpu.memory_space<vmem>>, vector<1x32xf32>
    %7 = arith.addf %5, %6 : vector<1x32xf32>
    %c0_2 = arith.constant 0 : index
    %c0_3 = arith.constant 0 : index
    %8 = vector.load %arg7[%c0_2, %c0_3] : memref<8x32xf32, #tpu.memory_space<vmem>>, vector<1x32xf32>
    tpu.vector_store %arg7[%c0_2, %c0_3], %7 {strides = array<i32>} : memref<8x32xf32, #tpu.memory_space<vmem>>, vector<1x32xf32>,
    %c1_i32 = arith.constant 1 : i32
    %9 = arith.addi %0, %c1_i32 : i32
    %10 = arith.index_cast %9 : i32 to index
    %11 = memref.load %arg1[%10] : memref<16xi32, #tpu.memory_space<smem>>
    %12 = arith.index_cast %11 : i32 to index
    %c0_4 = arith.constant 0 : index
    %13 = vector.load %arg2[%12, %c0_4] : memref<128x32xf32, #tpu.memory_space<vmem>>, vector<1x32xf32>
    %c1 = arith.constant 1 : index
    %c0_5 = arith.constant 0 : index
    %14 = vector.load %arg3[%c1, %c0_5] : memref<8x32xf32, #tpu.memory_space<vmem>>, vector<1x32xf32>
    %15 = arith.addf %13, %14 : vector<1x32xf32>
    %c1_6 = arith.constant 1 : index
    %c0_7 = arith.constant 0 : index
    %16 = vector.load %arg7[%c1_6, %c0_7] : memref<8x32xf32, #tpu.memory_space<vmem>>, vector<1x32xf32>
    tpu.vector_store %arg7[%c1_6, %c0_7], %15 {strides = array<i32>} : memref<8x32xf32, #tpu.memory_space<vmem>>, vector<1x32xf32>,
    %c2_i32 = arith.constant 2 : i32
    %17 = arith.addi %0, %c2_i32 : i32
    %18 = arith.index_cast %17 : i32 to index
    %19 = memref.load %arg1[%18] : memref<16xi32, #tpu.memory_space<smem>>
    %20 = arith.index_cast %19 : i32 to index
    %c0_8 = arith.constant 0 : index
    %21 = vector.load %arg2[%20, %c0_8] : memref<128x32xf32, #tpu.memory_space<vmem>>, vector<1x32xf32>
    %c2 = arith.constant 2 : index
    %c0_9 = arith.constant 0 : index
    %22 = vector.load %arg3[%c2, %c0_9] : memref<8x32xf32, #tpu.memory_space<vmem>>, vector<1x32xf32>
    %23 = arith.addf %21, %22 : vector<1x32xf32>
    %c2_10 = arith.constant 2 : index
    %c0_11 = arith.constant 0 : index
    %24 = vector.load %arg7[%c2_10, %c0_11] : memref<8x32xf32, #tpu.memory_space<vmem>>, vector<1x32xf32>
    tpu.vector_store %arg7[%c2_10, %c0_11], %23 {strides = array<i32>} : memref<8x32xf32, #tpu.memory_space<vmem>>, vector<1x32xf32>,
    %c3_i32 = arith.constant 3 : i32
    %25 = arith.addi %0, %c3_i32 : i32
    %26 = arith.index_cast %25 : i32 to index
    %27 = memref.load %arg1[%26] : memref<16xi32, #tpu.memory_space<smem>>
    %28 = arith.index_cast %27 : i32 to index
    %c0_12 = arith.constant 0 : index
    %29 = vector.load %arg2[%28, %c0_12] : memref<128x32xf32, #tpu.memory_space<vmem>>, vector<1x32xf32>
    %c3 = arith.constant 3 : index
    %c0_13 = arith.constant 0 : index
    %30 = vector.load %arg3[%c3, %c0_13] : memref<8x32xf32, #tpu.memory_space<vmem>>, vector<1x32xf32>
    %31 = arith.addf %29, %30 : vector<1x32xf32>
    %c3_14 = arith.constant 3 : index
    %c0_15 = arith.constant 0 : index
    %32 = vector.load %arg7[%c3_14, %c0_15] : memref<8x32xf32, #tpu.memory_space<vmem>>, vector<1x32xf32>
    tpu.vector_store %arg7[%c3_14, %c0_15], %31 {strides = array<i32>} : memref<8x32xf32, #tpu.memory_space<vmem>>, vector<1x32xf32>,
    %c4_i32 = arith.constant 4 : i32
    %33 = arith.addi %0, %c4_i32 : i32
    %34 = arith.index_cast %33 : i32 to index
    %35 = memref.load %arg1[%34] : memref<16xi32, #tpu.memory_space<smem>>
    %36 = arith.index_cast %35 : i32 to index
    %c0_16 = arith.constant 0 : index
    %37 = vector.load %arg2[%36, %c0_16] : memref<128x32xf32, #tpu.memory_space<vmem>>, vector<1x32xf32>
    %c4 = arith.constant 4 : index
    %c0_17 = arith.constant 0 : index
    %38 = vector.load %arg3[%c4, %c0_17] : memref<8x32xf32, #tpu.memory_space<vmem>>, vector<1x32xf32>
    %39 = arith.addf %37, %38 : vector<1x32xf32>
    %c4_18 = arith.constant 4 : index
    %c0_19 = arith.constant 0 : index
    %40 = vector.load %arg7[%c4_18, %c0_19] : memref<8x32xf32, #tpu.memory_space<vmem>>, vector<1x32xf32>
    tpu.vector_store %arg7[%c4_18, %c0_19], %39 {strides = array<i32>} : memref<8x32xf32, #tpu.memory_space<vmem>>, vector<1x32xf32>,
    %c5_i32 = arith.constant 5 : i32
    %41 = arith.addi %0, %c5_i32 : i32
    %42 = arith.index_cast %41 : i32 to index
    %43 = memref.load %arg1[%42] : memref<16xi32, #tpu.memory_space<smem>>
    %44 = arith.index_cast %43 : i32 to index
    %c0_20 = arith.constant 0 : index
    %45 = vector.load %arg2[%44, %c0_20] : memref<128x32xf32, #tpu.memory_space<vmem>>, vector<1x32xf32>
    %c5 = arith.constant 5 : index
    %c0_21 = arith.constant 0 : index
    %46 = vector.load %arg3[%c5, %c0_21] : memref<8x32xf32, #tpu.memory_space<vmem>>, vector<1x32xf32>
    %47 = arith.addf %45, %46 : vector<1x32xf32>
    %c5_22 = arith.constant 5 : index
    %c0_23 = arith.constant 0 : index
    %48 = vector.load %arg7[%c5_22, %c0_23] : memref<8x32xf32, #tpu.memory_space<vmem>>, vector<1x32xf32>
    tpu.vector_store %arg7[%c5_22, %c0_23], %47 {strides = array<i32>} : memref<8x32xf32, #tpu.memory_space<vmem>>, vector<1x32xf32>,
    %c6_i32 = arith.constant 6 : i32
    %49 = arith.addi %0, %c6_i32 : i32
    %50 = arith.index_cast %49 : i32 to index
    %51 = memref.load %arg1[%50] : memref<16xi32, #tpu.memory_space<smem>>
    %52 = arith.index_cast %51 : i32 to index
    %c0_24 = arith.constant 0 : index
    %53 = vector.load %arg2[%52, %c0_24] : memref<128x32xf32, #tpu.memory_space<vmem>>, vector<1x32xf32>
    %c6 = arith.constant 6 : index
    %c0_25 = arith.constant 0 : index
    %54 = vector.load %arg3[%c6, %c0_25] : memref<8x32xf32, #tpu.memory_space<vmem>>, vector<1x32xf32>
    %55 = arith.addf %53, %54 : vector<1x32xf32>
    %c6_26 = arith.constant 6 : index
    %c0_27 = arith.constant 0 : index
    %56 = vector.load %arg7[%c6_26, %c0_27] : memref<8x32xf32, #tpu.memory_space<vmem>>, vector<1x32xf32>
    tpu.vector_store %arg7[%c6_26, %c0_27], %55 {strides = array<i32>} : memref<8x32xf32, #tpu.memory_space<vmem>>, vector<1x32xf32>,
    %c7_i32 = arith.constant 7 : i32
    %57 = arith.addi %0, %c7_i32 : i32
    %58 = arith.index_cast %57 : i32 to index
    %59 = memref.load %arg1[%58] : memref<16xi32, #tpu.memory_space<smem>>
    %60 = arith.index_cast %59 : i32 to index
    %c0_28 = arith.constant 0 : index
    %61 = vector.load %arg2[%60, %c0_28] : memref<128x32xf32, #tpu.memory_space<vmem>>, vector<1x32xf32>
    %c7 = arith.constant 7 : index
    %c0_29 = arith.constant 0 : index
    %62 = vector.load %arg3[%c7, %c0_29] : memref<8x32xf32, #tpu.memory_space<vmem>>, vector<1x32xf32>
    %63 = arith.addf %61, %62 : vector<1x32xf32>
    %c7_30 = arith.constant 7 : index
    %c0_31 = arith.constant 0 : index
    %64 = vector.load %arg7[%c7_30, %c0_31] : memref<8x32xf32, #tpu.memory_space<vmem>>, vector<1x32xf32>
    tpu.vector_store %arg7[%c7_30, %c0_31], %63 {strides = array<i32>} : memref<8x32xf32, #tpu.memory_space<vmem>>, vector<1x32xf32>,
    %c0_32 = arith.constant 0 : index
    %c0_33 = arith.constant 0 : index
    %65 = vector.load %arg7[%c0_32, %c0_33] : memref<8x32xf32, #tpu.memory_space<vmem>>, vector<8x32xf32>
    %cst = arith.constant dense<0.000000e+00> : vector<8xf32>
    %66 = vector.multi_reduction <add>, %65, %cst [1] : vector<8x32xf32> to vector<8xf32>
    %67 = vector.shape_cast %66 : vector<8xf32> to vector<8x1xf32>
    %68 = arith.mulf %65, %65 : vector<8x32xf32>
    %cst_34 = arith.constant dense<0.000000e+00> : vector<8xf32>
    %69 = vector.multi_reduction <add>, %68, %cst_34 [1] : vector<8x32xf32> to vector<8xf32>
    %70 = vector.shape_cast %69 : vector<8xf32> to vector<8x1xf32>
    %cst_35 = arith.constant 3.125000e-02 : f32
    %71 = vector.broadcast %cst_35 : f32 to vector<8x1xf32>
    %72 = arith.mulf %67, %71 : vector<8x1xf32>
    %cst_36 = arith.constant 3.125000e-02 : f32
    %73 = vector.broadcast %cst_36 : f32 to vector<8x1xf32>
    %74 = arith.mulf %70, %73 : vector<8x1xf32>
    %75 = arith.mulf %72, %72 : vector<8x1xf32>
    %76 = arith.subf %74, %75 : vector<8x1xf32>
    %cst_37 = arith.constant 0.000000e+00 : f32
    %77 = vector.broadcast %cst_37 : f32 to vector<8x1xf32>
    %78 = arith.maximumf %76, %77 : vector<8x1xf32>
    %cst_38 = arith.constant 9.99999974E-6 : f32
    %79 = vector.broadcast %cst_38 : f32 to vector<8x1xf32>
    %80 = arith.addf %78, %79 : vector<8x1xf32>
    %81 = math.rsqrt %80 : vector<8x1xf32>
    %c0_39 = arith.constant 0 : index
    %c0_40 = arith.constant 0 : index
    %82 = vector.load %arg4[%c0_39, %c0_40] : memref<2x32xf32, #tpu.memory_space<vmem>>, vector<1x32xf32>
    %83 = vector.broadcast %82 : vector<1x32xf32> to vector<8x32xf32>
    %84 = vector.broadcast %81 : vector<8x1xf32> to vector<8x32xf32>
    %85 = arith.mulf %83, %84 : vector<8x32xf32>
    %c1_41 = arith.constant 1 : index
    %c0_42 = arith.constant 0 : index
    %86 = vector.load %arg4[%c1_41, %c0_42] : memref<2x32xf32, #tpu.memory_space<vmem>>, vector<1x32xf32>
    %87 = vector.broadcast %72 : vector<8x1xf32> to vector<8x32xf32>
    %88 = arith.mulf %87, %85 : vector<8x32xf32>
    %89 = vector.broadcast %86 : vector<1x32xf32> to vector<8x32xf32>
    %90 = arith.subf %89, %88 : vector<8x32xf32>
    %91 = arith.mulf %65, %85 : vector<8x32xf32>
    %92 = arith.addf %91, %90 : vector<8x32xf32>
    %93 = arith.truncf %92 : vector<8x32xf32> to vector<8x32xbf16>
    %c0_43 = arith.constant 0 : index
    %c0_44 = arith.constant 0 : index
    %94 = vector.load %arg5[%c0_43, %c0_44] : memref<32x128xbf16, #tpu.memory_space<vmem>>, vector<32x128xbf16>
    %cst_45 = arith.constant dense<0.000000e+00> : vector<8x128xf32>
    %95 = tpu.matmul %93, %94, %cst_45 {dimension_numbers = #tpu.dot_dimension_numbers<[1], [0], [0], [1], [0, 0, 1, 1], [], []>} : vector<8x32xbf16>, vector<32x128xbf16>, vector<8x128xf32> -> vector<8x128xf32>
    %c0_46 = arith.constant 0 : index
    %c0_47 = arith.constant 0 : index
    %96 = vector.load %arg6[%c0_46, %c0_47] : memref<8x128xf32, #tpu.memory_space<vmem>>, vector<8x128xf32>
    tpu.vector_store %arg6[%c0_46, %c0_47], %95 {strides = array<i32>} : memref<8x128xf32, #tpu.memory_space<vmem>>, vector<8x128xf32>,
    return
  }
  func.func @transform_0(%arg0: i32, %arg1: memref<16xi32, #tpu.memory_space<smem>>) -> (i32, i32) {
    %c0_i32 = arith.constant 0 : i32
    %c0_i32_0 = arith.constant 0 : i32
    %c0_i32_1 = arith.constant 0 : i32
    return %c0_i32, %c0_i32_0 : i32, i32
  }
  func.func @transform_1(%arg0: i32, %arg1: memref<16xi32, #tpu.memory_space<smem>>) -> (i32, i32) {
    %c0_i32 = arith.constant 0 : i32
    %c0_i32_0 = arith.constant 0 : i32
    %c0_i32_1 = arith.constant 0 : i32
    return %c0_i32, %c0_i32_0 : i32, i32
  }
  func.func @transform_2(%arg0: i32, %arg1: memref<16xi32, #tpu.memory_space<smem>>) -> (i32, i32) {
    %c0_i32 = arith.constant 0 : i32
    %c0_i32_0 = arith.constant 0 : i32
    %c0_i32_1 = arith.constant 0 : i32
    return %c0_i32, %c0_i32_0 : i32, i32
  }
  func.func @transform_3(%arg0: i32, %arg1: memref<16xi32, #tpu.memory_space<smem>>) -> (i32, i32) {
    %c0_i32 = arith.constant 0 : i32
    %c0_i32_0 = arith.constant 0 : i32
    %c0_i32_1 = arith.constant 0 : i32
    return %c0_i32, %c0_i32_0 : i32, i32
  }
  func.func @transform_4(%arg0: i32, %arg1: memref<16xi32, #tpu.memory_space<smem>>) -> (i32, i32) {
    %c0_i32 = arith.constant 0 : i32
    %c0_i32_0 = arith.constant 0 : i32
    return %arg0, %c0_i32 : i32, i32
  }
}

</mosaic_0001>

<llo_original>
// kernel: tpu_custom_call.1
$region0: #{tpu_custom_call.1}
  #allocation0 [shape = 'u32[]', space=smem, size = 0x4, offset = 0x4, fixed_abs, tag = 'smem constant byte address 0x4 - core index']
  #allocation1 [shape = 'u32[72,128]{1,0:T(1,128)}', space=vmem, size = 0x9000, scoped, tag = 'internal scratch']
  #allocation2 [shape = 'f32[8,32]{1,0:T(8,128)}', space=vmem, size = 0x1000, scoped, tag = 'scratch operand']
  #allocation3 [shape = 's32[1]{0}', space=sflag, size = 0x4, scoped, tag = 'scoped memory for tpu_custom_call.1']
  #allocation4 [shape = 'u8[512]{0}', space=smem, size = 0x200, scoped, tag = 'prefetched SMEM operand 0']
  %s0 = inlined_call_operand.vmem [shape: s32[16], index: 0, kind: input, shape index: {}]
  %s1 = inlined_call_operand.vmem [shape: f32[128,32], index: 1, kind: input, shape index: {}]
  %s2 = inlined_call_operand.vmem [shape: f32[8,32], index: 2, kind: input, shape index: {}]
  %s3 = inlined_call_operand.vmem [shape: f32[2,32], index: 3, kind: input, shape index: {}]
  %s4 = inlined_call_operand.vmem [shape: bf16[32,128], index: 4, kind: input, shape index: {}]
  %s5 = inlined_call_operand.hbm [shape: f32[16,128], index: 5, kind: output, shape index: {}]
  %s6 = sld [smem:[#allocation0]]
  $region49: #{tpu_custom_call.1} parent=0
    _
  %s8 = ssub.s32 1, %s6
  %s9 = scalar_select 0, %s8, %s6
  %s11 = sshll.u32 %s0, 4
  %s12 = int_to_ptr.vmem [resolvable:$true] %s11
  %14 = dma.vmem_to_smem %s12, 16, [#allocation4], [#allocation3]
  %16 = dma.done [#allocation3], 16
  %17 = sfence
  $region1: #{tpu_custom_call.1} parent=0
    #allocation5 [shape = 'u8[8192]{0}', space=vmem, size = 0x2000, scoped, tag = 'output window, operand 0']
    #allocation6 [shape = 's32[2]{0}', space=sflag, size = 0x8, scoped, tag = 'scoped memory for tpu_custom_call.1']
    %18 = vsyncpa [#allocation6], 0
    %s19 = scalar_lea.sflag [#allocation6], 1
    %20 = vsyncpa %s19, 0
    loop: start=0, step=1, limit=4
    $region2: #{tpu_custom_call.1} parent=1 // loop_pre_header
      _
    $region3: #{tpu_custom_call.1} parent=1 // loop_header
      %s22 = sphi 0, %s26
      %p23 = scmp.ge.s32.totalorder %s22, 4
      %s30 = sphi 0, %s30
      %s32 = sphi 0, %s30
      %s33 = sphi 0, %s32
      %s47 = sphi 0, %s33
      %s51 = sphi 0, %s51
      %s53 = sphi 0, %s51
      %s54 = sphi 0, %s53
      %s68 = sphi 0, %s54
      %s72 = sphi 0, %s72
      %s74 = sphi 0, %s72
      %s75 = sphi 0, %s74
      %s89 = sphi 0, %s75
      %s93 = sphi 0, %s93
      %s95 = sphi 0, %s93
      %s96 = sphi 0, %s95
      %s110 = sphi 0, %s96
      %s116 = sphi 0, %s118
      %s119 = sphi 0, %s116
      %s120 = sphi 0, %s119
      %s136 = sphi 0, %s120
    $region4: #{tpu_custom_call.1} parent=1 // loop_header_branch
      %25 = sbr.rel (%p23) target = $region8
    $region5: #{tpu_custom_call.1} parent=1 // loop_body
      %s27 = ssub.s32 %s22, 1
      %s28 = ssub.s32 %s22, 2
      %s29 = sadd.s32 %s22, 1
      %s31 = sadd.s32 %s30, 1
      %p34 = scmp.eq.s32.totalorder %s22, 1
      %p35 = scmp.ne.s32.totalorder %s30, %s32
      %p36 = scmp.eq.s32.totalorder %s22, 0
      %p37 = por %p35, %p36
      %p38 = scmp.ne.s32.totalorder %s30, %s32
      %p39 = scmp.eq.s32.totalorder %s27, 1
      %p40 = por %p38, %p39
      %p41 = scmp.ne.s32.totalorder %s32, %s33
      %p42 = scmp.eq.s32.totalorder %s27, 0
      %p43 = por %p41, %p42
      %p44 = scmp.ne.s32.totalorder %s32, %s33
      %p45 = scmp.eq.s32.totalorder %s28, 1
      %p46 = por %p44, %p45
      %p48 = scmp.ne.s32.totalorder %s33, %s47
      %p49 = scmp.eq.s32.totalorder %s28, 0
      %p50 = por %p48, %p49
      %s52 = sadd.s32 %s51, 1
      %p55 = scmp.eq.s32.totalorder %s22, 1
      %p56 = scmp.ne.s32.totalorder %s51, %s53
      %p57 = scmp.eq.s32.totalorder %s22, 0
      %p58 = por %p56, %p57
      %p59 = scmp.ne.s32.totalorder %s51, %s53
      %p60 = scmp.eq.s32.totalorder %s27, 1
      %p61 = por %p59, %p60
      %p62 = scmp.ne.s32.totalorder %s53, %s54
      %p63 = scmp.eq.s32.totalorder %s27, 0
      %p64 = por %p62, %p63
      %p65 = scmp.ne.s32.totalorder %s53, %s54
      %p66 = scmp.eq.s32.totalorder %s28, 1
      %p67 = por %p65, %p66
      %p69 = scmp.ne.s32.totalorder %s54, %s68
      %p70 = scmp.eq.s32.totalorder %s28, 0
      %p71 = por %p69, %p70
      %s73 = sadd.s32 %s72, 1
      %p76 = scmp.eq.s32.totalorder %s22, 1
      %p77 = scmp.ne.s32.totalorder %s72, %s74
      %p78 = scmp.eq.s32.totalorder %s22, 0
      %p79 = por %p77, %p78
      %p80 = scmp.ne.s32.totalorder %s72, %s74
      %p81 = scmp.eq.s32.totalorder %s27, 1
      %p82 = por %p80, %p81
      %p83 = scmp.ne.s32.totalorder %s74, %s75
      %p84 = scmp.eq.s32.totalorder %s27, 0
      %p85 = por %p83, %p84
      %p86 = scmp.ne.s32.totalorder %s74, %s75
      %p87 = scmp.eq.s32.totalorder %s28, 1
      %p88 = por %p86, %p87
      %p90 = scmp.ne.s32.totalorder %s75, %s89
      %p91 = scmp.eq.s32.totalorder %s28, 0
      %p92 = por %p90, %p91
      %s94 = sadd.s32 %s93, 1
      %p97 = scmp.eq.s32.totalorder %s22, 1
      %p98 = scmp.ne.s32.totalorder %s93, %s95
      %p99 = scmp.eq.s32.totalorder %s22, 0
      %p100 = por %p98, %p99
      %p101 = scmp.ne.s32.totalorder %s93, %s95
      %p102 = scmp.eq.s32.totalorder %s27, 1
      %p103 = por %p101, %p102
      %p104 = scmp.ne.s32.totalorder %s95, %s96
      %p105 = scmp.eq.s32.totalorder %s27, 0
      %p106 = por %p104, %p105
      %p107 = scmp.ne.s32.totalorder %s95, %s96
      %p108 = scmp.eq.s32.totalorder %s28, 1
      %p109 = por %p107, %p108
      %p111 = scmp.ne.s32.totalorder %s96, %s110
      %p112 = scmp.eq.s32.totalorder %s28, 0
      %p113 = por %p111, %p112
      %s114 = ssub.s32 %s22, %s29
      %p115 = scmp.eq.s32.totalorder %s114, 0
      %s117 = sadd.s32 %s116, 1
      %s118 = scalar_select %p115, %s116, %s117
      %p121 = pneg %p115
      %p122 = scmp.eq.s32.totalorder %s22, 1
      %p123 = por %p121, %p122
      %p124 = scmp.ne.s32.totalorder %s116, %s119
      %p125 = scmp.eq.s32.totalorder %s22, 0
      %p126 = por %p124, %p125
      %p127 = scmp.ne.s32.totalorder %s116, %s119
      %p128 = scmp.eq.s32.totalorder %s27, 1
      %p129 = por %p127, %p128
      %p130 = scmp.ne.s32.totalorder %s119, %s120
      %p131 = scmp.eq.s32.totalorder %s27, 0
      %p132 = por %p130, %p131
      %p133 = scmp.ne.s32.totalorder %s119, %s120
      %p134 = scmp.eq.s32.totalorder %s28, 1
      %p135 = por %p133, %p134
      %p137 = scmp.ne.s32.totalorder %s120, %s136
      %p138 = scmp.eq.s32.totalorder %s28, 0
      %p139 = por %p137, %p138
      %p140 = scmp.le.s32.totalorder 1, %s22
      %p141 = scmp.lt.s32.totalorder %s22, 3
      %p142 = pnand %p140, %p141
      %p143 = pneg %p142
      // Predicated region
      $region9: #{tpu_custom_call.1} parent=5 // pred_check
        _
      $region10: #{tpu_custom_call.1} parent=5 // pred_check_branch
        %145 = sbr.rel (%p142) target = $region12
      $region11: #{tpu_custom_call.1} parent=5 // pred_region
        %s146 = ssub.s32 %s22, 1
        // Predicated region
        $region13: #{tpu_custom_call.1} parent=11 // pred_check
          %p147 = pneg %p43
        $region14: #{tpu_custom_call.1} parent=11 // pred_check_branch
          %149 = sbr.rel (%p147) target = $region16
        $region15: #{tpu_custom_call.1} parent=11 // pred_region
          _
        $region16: #{tpu_custom_call.1} parent=11 // pred_fallthru
          _
        // Predicated region
        $region17: #{tpu_custom_call.1} parent=11 // pred_check
          %p150 = pneg %p64
        $region18: #{tpu_custom_call.1} parent=11 // pred_check_branch
          %152 = sbr.rel (%p150) target = $region20
        $region19: #{tpu_custom_call.1} parent=11 // pred_region
          _
        $region20: #{tpu_custom_call.1} parent=11 // pred_fallthru
          _
        // Predicated region
        $region21: #{tpu_custom_call.1} parent=11 // pred_check
          %p153 = pneg %p85
        $region22: #{tpu_custom_call.1} parent=11 // pred_check_branch
          %155 = sbr.rel (%p153) target = $region24
        $region23: #{tpu_custom_call.1} parent=11 // pred_region
          _
        $region24: #{tpu_custom_call.1} parent=11 // pred_fallthru
          _
        // Predicated region
        $region25: #{tpu_custom_call.1} parent=11 // pred_check
          %p156 = pneg %p106
        $region26: #{tpu_custom_call.1} parent=11 // pred_check_branch
          %158 = sbr.rel (%p156) target = $region28
        $region27: #{tpu_custom_call.1} parent=11 // pred_region
          _
        $region28: #{tpu_custom_call.1} parent=11 // pred_fallthru
          _
      $region12: #{tpu_custom_call.1} parent=5 // pred_fallthru
        _
      %p159 = scmp.lt.s32.totalorder %s22, 2
      // Predicated region
      $region29: #{tpu_custom_call.1} parent=5 // pred_check
        %p160 = pneg %p159
      $region30: #{tpu_custom_call.1} parent=5 // pred_check_branch
        %162 = sbr.rel (%p160) target = $region32
      $region31: #{tpu_custom_call.1} parent=5 // pred_region
        _
      $region32: #{tpu_custom_call.1} parent=5 // pred_fallthru
        _
      %p163 = scmp.le.s32.totalorder 1, %s22
      %p164 = scmp.lt.s32.totalorder %s22, 3
      %p165 = pnand %p163, %p164
      %p166 = pneg %p165
      // Predicated region
      $region33: #{tpu_custom_call.1} parent=5 // pred_check
        _
      $region34: #{tpu_custom_call.1} parent=5 // pred_check_branch
        %168 = sbr.rel (%p165) target = $region36
      $region35: #{tpu_custom_call.1} parent=5 // pred_region
        %s169 = ssub.s32 %s22, 1
        %p170 = pneg %p43
        %p171 = pneg %p40
        %p172 = pneg %p64
        %p173 = pneg %p61
        %p174 = pneg %p85
        %p175 = pneg %p82
        %p176 = pneg %p106
        %p177 = pneg %p103
        %p178 = pneg %p132
        %p179 = pneg %p129
        %s180 = sand.u32 %s119, 1
        %s181 = scalar_lea.sflag [#allocation6], %s180
        %s182 = sand.u32 %s119, 1
        %s183 = smul.addr %s182, 8
        %s184 = scalar_lea.vmem [#allocation5], %s183
        %s186 = smul.u32 %s27, 8
        %s187 = sld [smem:[#allocation4 + %s186]]
        %s188 = scalar_lea.vmem %s1, %s187
        %v189 = vld [vmem:[%s188] sm:$0x1]
        %v190 = vld [vmem:[%s2] sm:$0x1]
        %v191 = vadd.f32 %v189, %v190
        %vm192 = vcmask 253952
        %193 = vst.msk [vmem:[#allocation2] sm:$0x1] %vm192, %v191
        %s194 = sadd.s32 %s186, 1
        %s195 = sld [smem:[#allocation4 + %s194]]
        %s196 = scalar_lea.vmem %s1, %s195
        %v197 = vld [vmem:[%s196] sm:$0x1]
        %v198 = vld [vmem:[%s2 + $0x1] sm:$0x1]
        %v199 = vadd.f32 %v197, %v198
        %200 = vst.msk [vmem:[#allocation2 + $0x1] sm:$0x1] %vm192, %v199
        %s201 = sadd.s32 %s186, 2
        %s202 = sld [smem:[#allocation4 + %s201]]
        %s203 = scalar_lea.vmem %s1, %s202
        %v204 = vld [vmem:[%s203] sm:$0x1]
        %v205 = vld [vmem:[%s2 + $0x2] sm:$0x1]
        %v206 = vadd.f32 %v204, %v205
        %207 = vst.msk [vmem:[#allocation2 + $0x2] sm:$0x1] %vm192, %v206
        %s208 = sadd.s32 %s186, 3
        %s209 = sld [smem:[#allocation4 + %s208]]
        %s210 = scalar_lea.vmem %s1, %s209
        %v211 = vld [vmem:[%s210] sm:$0x1]
        %v212 = vld [vmem:[%s2 + $0x3] sm:$0x1]
        %v213 = vadd.f32 %v211, %v212
        %214 = vst.msk [vmem:[#allocation2 + $0x3] sm:$0x1] %vm192, %v213
        %s215 = sadd.s32 %s186, 4
        %s216 = sld [smem:[#allocation4 + %s215]]
        %s217 = scalar_lea.vmem %s1, %s216
        %v218 = vld [vmem:[%s217] sm:$0x1]
        %v219 = vld [vmem:[%s2 + $0x4] sm:$0x1]
        %v220 = vadd.f32 %v218, %v219
        %221 = vst.msk [vmem:[#allocation2 + $0x4] sm:$0x1] %vm192, %v220
        %s222 = sadd.s32 %s186, 5
        %s223 = sld [smem:[#allocation4 + %s222]]
        %s224 = scalar_lea.vmem %s1, %s223
        %v225 = vld [vmem:[%s224] sm:$0x1]
        %v226 = vld [vmem:[%s2 + $0x5] sm:$0x1]
        %v227 = vadd.f32 %v225, %v226
        %228 = vst.msk [vmem:[#allocation2 + $0x5] sm:$0x1] %vm192, %v227
        %s229 = sadd.s32 %s186, 6
        %s230 = sld [smem:[#allocation4 + %s229]]
        %s231 = scalar_lea.vmem %s1, %s230
        %v232 = vld [vmem:[%s231] sm:$0x1]
        %v233 = vld [vmem:[%s2 + $0x6] sm:$0x1]
        %v234 = vadd.f32 %v232, %v233
        %235 = vst.msk [vmem:[#allocation2 + $0x6] sm:$0x1] %vm192, %v234
        %s236 = sadd.s32 %s186, 7
        %s237 = sld [smem:[#allocation4 + %s236]]
        %s238 = scalar_lea.vmem %s1, %s237
        %v239 = vld [vmem:[%s238] sm:$0x1]
        %v240 = vld [vmem:[%s2 + $0x7] sm:$0x1]
        %v241 = vadd.f32 %v239, %v240
        %242 = vst.msk [vmem:[#allocation2 + $0x7] sm:$0x1] %vm192, %v241
        %v243 = vld [vmem:[#allocation2] sm:$0xff]
        %vm244 = vcmask 261120
        %v245 = vsel %vm244, %v243, 0.0
        %246 = vadd.xlane.f32.xlu0 %v245
        %v247 = vpop.xlane.xlu0 %246
        %v248 = vmul.f32 %v243, %v243
        %v249 = vsel %vm244, %v248, 0.0
        %250 = vadd.xlane.f32.xlu0 %v249
        %v251 = vpop.xlane.xlu0 %250
        %v252 = vmul.f32 %v247, 0.03125
        %v253 = vmul.f32 %v251, 0.03125
        %v254 = vmul.f32 %v252, %v252
        %v255 = vsub.f32 %v253, %v254
        %v256 = vmax.f32 %v255, 0.0
        %v257 = vadd.f32 %v256, 1e-05
        %v258 = vrsqrt.pop %v257
        %v259 = vmul.f32 %v258, %v257
        %v260 = vmul.f32 %v259, %v258
        %v261 = vmul.f32 0.5, %v260
        %v262 = vsub.f32 1.5, %v261
        %v263 = vmul.f32 %v258, %v262
        %vm264 = vweird.f32 %v257
        %vm265 = vweird.f32 %v258
        %vm266 = vmor %vm264, %vm265
        %v267 = vsel %vm266, %v258, %v263
        %v268 = vld [vmem:[%s3] sm:$0x1]
        %v269 = vperm.slane %v268, 0
        %v270 = vmul.f32 %v269, %v267
        %v271 = vld [vmem:[%s3 + $0x1] sm:$0x1]
        %v272 = vmul.f32 %v252, %v270
        %v273 = vperm.slane %v271, 0
        %v274 = vsub.f32 %v273, %v272
        %v275 = vmul.f32 %v243, %v270
        %v276 = vadd.f32 %v275, %v274
        %v277 = vpack.c.bf16 %v276, %v276
        %v278 = vld [vmem:[%s4] sm:$0xf]
        %v279 = vld [vmem:[%s4 + $0x4] sm:$0xf]
        %v280 = vld [vmem:[%s4 + $0x8] sm:$0xf]
        %v281 = vld [vmem:[%s4 + $0xc] sm:$0xf]
        %v286 = vunpack.c.l.b16 %v278
        %v287 = vunpack.c.l.b16 %v279
        %v288 = vunpack.c.l.b16 %v280
        %v289 = vunpack.c.l.b16 %v281
        %v290 = vpack.c.b16 %v287, %v286
        %v291 = vpack.c.b16 %v289, %v288
        %v295 = vsel %vm244, %v277, 0
        %297 = vmatpush.bf16.msra.mxu0 0
        %298 = vmatpush.bf16.msra.mxu0 0
        %299 = vmatpush.bf16.msra.mxu0 0
        %300 = vmatpush.bf16.msra.mxu0 0
        %301 = vmatpush.bf16.msra.mxu0 0
        %302 = vmatpush.bf16.msra.mxu0 0
        %303 = vmatpush.bf16.msra.mxu0 %v291
        %304 = vmatpush.bf16.msra.mxu0 %v290
        %305 = vmatmul.bf16.gmra.mxu0 %v295
        %v306 = vpop.f32.mrf.mxu0
        %v307 = vadd.f32 0.0, %v306
        %v308 = vpop.f32.mrf.mxu0
        %309 = vdwg.mxu0
        %310 = vst [vmem:[%s184] sm:$0xff] %v307
        %s311 = sand.u32 %s119, 1
        %s312 = scalar_lea.sflag [#allocation6], %s311
        %s313 = sand.u32 %s119, 1
        %s314 = smul.addr %s313, 8
        %s315 = scalar_lea.vmem [#allocation5], %s314
        // Predicated region
        $region37: #{tpu_custom_call.1} parent=35 // pred_check
          %p316 = pneg %p129
        $region38: #{tpu_custom_call.1} parent=35 // pred_check_branch
          %318 = sbr.rel (%p316) target = $region40
        $region39: #{tpu_custom_call.1} parent=35 // pred_region
          %320 = vsyncadd %s312, 0
          %s321 = smul.addr %s27, 8
          %s322 = scalar_lea.hbm %s5, %s321
          %s324 = sshll.u32 %s315, 4
          %s325 = int_to_ptr.vmem [resolvable:$true] %s324
          %s326 = sshll.u32 %s322, 4
          %s327 = int_to_ptr.hbm [resolvable:$true] %s326
          %329 = dma.vmem_to_hbm [thread:$0]  %s325, 128, %s327, %s312
        $region40: #{tpu_custom_call.1} parent=35 // pred_fallthru
          _
      $region36: #{tpu_custom_call.1} parent=5 // pred_fallthru
        _
      %p330 = scmp.le.s32.totalorder 2, %s22
      // Predicated region
      $region41: #{tpu_custom_call.1} parent=5 // pred_check
        %p331 = pneg %p330
      $region42: #{tpu_custom_call.1} parent=5 // pred_check_branch
        %333 = sbr.rel (%p331) target = $region44
      $region43: #{tpu_custom_call.1} parent=5 // pred_region
        %s334 = ssub.s32 %s22, 2
        // Predicated region
        $region45: #{tpu_custom_call.1} parent=43 // pred_check
          %p335 = pneg %p135
        $region46: #{tpu_custom_call.1} parent=43 // pred_check_branch
          %337 = sbr.rel (%p335) target = $region48
        $region47: #{tpu_custom_call.1} parent=43 // pred_region
          %s338 = sand.u32 %s120, 1
          %s339 = scalar_lea.sflag [#allocation6], %s338
          %s340 = sand.u32 %s120, 1
          %s341 = smul.addr %s340, 8
          %s342 = scalar_lea.vmem [#allocation5], %s341
          %344 = dma.done %s339, 128
        $region48: #{tpu_custom_call.1} parent=43 // pred_fallthru
          _
      $region44: #{tpu_custom_call.1} parent=5 // pred_fallthru
        _
    $region6: #{tpu_custom_call.1} parent=1 // loop_footer
      %s26 = sadd.s32 1, %s22
    $region7: #{tpu_custom_call.1} parent=1 // loop_footer_branch
      %21 = sbr.rel target = $region3
    $region8: #{tpu_custom_call.1} parent=1 // loop_exit
      _
    %345 = vsyncpa [#allocation6], 1
    %s346 = scalar_lea.sflag [#allocation6], 1
    %347 = vsyncpa %s346, 1

</llo_original>
